<compile_context>
chip_gen: v6e
topology: v6e:2x2x1
jax: 0.10.0
libtpu: 0.0.40
codegen_flags: <defaults>
</compile_context>

<pallas_src>
import jax
import jax.numpy as jnp
from jax.experimental import pallas as pl
from jax.experimental.pallas import tpu as pltpu

# ---- hyperparameters implied by the PyTorch module ----
sentences = ['i love you', 'he loves me', 'she likes baseball',
             'i hate you', 'sorry for that', 'this is awful']
labels = [1, 1, 1, 0, 0, 0]
word_list = ' '.join(sentences).split()
vocab = sorted(list(set(word_list)))
vocab_size = len(vocab)            # 16
word2idx = {w: i for i, w in enumerate(vocab)}

EMBED = 2                          # embedding_size
OUT_CH = 3                         # conv output channels
NUM_CLASSES = len(set(labels))     # 2
SEQ_LEN = 3                        # every sentence has 3 words
KH = 2                             # conv kernel height (kernel width == EMBED)
H_OUT = SEQ_LEN - KH + 1           # 2 conv output rows; MaxPool2d((2,1)) -> 1
PATCH = KH * EMBED                 # 4 (pure-JAX reference only)

LANES = 128                        # batch elements per lane row
MAX_ROWS_PER_TILE = 8              # 8 sublane rows * 128 lanes = 1024 batch / step


def textcnn_kernel(x_ref, emb_ref, wc_ref, bc_ref, wf_ref, bf_ref, out_ref):
    """Fused TextCNN forward for one lane-dense batch tile.

    x_ref   : [SEQ_LEN, R, 128] int32 token ids           (VMEM)
    emb_ref : [vocab_size * EMBED] f32                     (SMEM)
    wc_ref  : [OUT_CH * KH * EMBED] f32 conv weight        (SMEM, torch row-major)
    bc_ref  : [OUT_CH] f32 conv bias                       (SMEM)
    wf_ref  : [NUM_CLASSES * OUT_CH] f32 fc weight         (SMEM, torch row-major)
    bf_ref  : [NUM_CLASSES] f32 fc bias                    (SMEM)
    out_ref : [NUM_CLASSES, R, 128] f32 logits             (VMEM)

    Precondition: token ids lie in [0, vocab_size).  Out-of-range ids produce a
    zero embedding here, whereas jnp.take / torch Embedding would clip / error.
    """
    r = x_ref.shape[1]
    plane = (r, LANES)
    zero = jnp.zeros(plane, jnp.float32)

    # Per-token planes, loaded once (hoisted out of the conv loops).
    xs = [x_ref[s] for s in range(SEQ_LEN)]                  # SEQ_LEN x [R,128]

    # ---- Embedding gather: unrolled compare/select over the 16-entry vocab.
    # One compare per (token, vocab) shared by both embedding components; each
    # SMEM scalar is broadcast to a plane once per vocab entry, not per select.
    e0 = [zero] * SEQ_LEN
    e1 = [zero] * SEQ_LEN
    for v in range(vocab_size):
        w0 = zero + emb_ref[v * EMBED + 0]
        w1 = zero + emb_ref[v * EMBED + 1]
        for s in range(SEQ_LEN):
            m = xs[s] == v
            e0[s] = jnp.where(m, w0, e0[s])
            e1[s] = jnp.where(m, w1, e1[s])

    # ---- Conv2d(1, OUT_CH, (KH, EMBED)) + ReLU + MaxPool2d((2,1)):
    # fully unrolled VPU multiply-adds (K=4 is far too small for the MXU).
    # SMEM weight scalars read once; bias broadcast hoisted out of the h loop.
    wc = [[[wc_ref[(oc * KH + kh) * EMBED + e] for e in range(EMBED)]
           for kh in range(KH)] for oc in range(OUT_CH)]
    pooled = []
    for oc in range(OUT_CH):
        bias = zero + bc_ref[oc]
        best = None
        for h in range(H_OUT):
            acc = bias
            for kh in range(KH):
                s = h + kh
                acc = acc + e0[s] * wc[oc][kh][0]
                acc = acc + e1[s] * wc[oc][kh][1]
            rel = jnp.maximum(acc, 0.0)                       # ReLU
            best = rel if best is None else jnp.maximum(best, rel)   # max-pool
        pooled.append(best)

    # ---- Linear(OUT_CH, NUM_CLASSES): unrolled VPU MACs; one lane-dense,
    # unmasked [R,128] store per class (densely packed logits).
    wf = [[wf_ref[c * OUT_CH + oc] for oc in range(OUT_CH)]
          for c in range(NUM_CLASSES)]
    for c in range(NUM_CLASSES):
        acc = zero + bf_ref[c]
        for oc in range(OUT_CH):
            acc = acc + pooled[oc] * wf[c][oc]
        out_ref[c] = acc


def _round_up(x, m):
    return ((x + m - 1) // m) * m


def textcnn_forward(X, emb_table, conv_w, conv_b, fc_w, fc_b):
    """X: [B, SEQ_LEN] int32 token ids. Returns logits [B, NUM_CLASSES] (f32)."""
    B = X.shape[0]
    rows = pl.cdiv(B, LANES)                    # groups of 128 batch elements
    # One tile while everything fits in <= 8 sublane rows; otherwise 8-row tiles
    # so large batches take several "parallel" grid steps (shards across v7x's
    # two TensorCores) while every plane stays one fully-utilized [8,128] vreg.
    r_tile = rows if rows <= MAX_ROWS_PER_TILE else MAX_ROWS_PER_TILE
    rows_pad = _round_up(rows, r_tile)
    b_pad = rows_pad * LANES
    grid = (rows_pad // r_tile,)                # (1,) for the toy B=6

    # Batch on the lane axis: [SEQ_LEN, rows_pad, 128]; padded slots hold token
    # id 0 and are sliced off below (never returned to the caller).
    Xp = jnp.zeros((SEQ_LEN, b_pad), jnp.int32)
    Xp = Xp.at[:, :B].set(X.astype(jnp.int32).T)
    Xp = Xp.reshape(SEQ_LEN, rows_pad, LANES)

    emb_flat = emb_table.reshape(-1).astype(jnp.float32)      # [V*E]
    wc_flat = conv_w.reshape(-1).astype(jnp.float32)          # [OC*KH*E]
    bc_flat = conv_b.reshape(-1).astype(jnp.float32)          # [OC]
    wf_flat = fc_w.reshape(-1).astype(jnp.float32)            # [C*OC]
    bf_flat = fc_b.reshape(-1).astype(jnp.float32)            # [C]

    smem = pl.BlockSpec(memory_space=pltpu.MemorySpace.SMEM)
    out_pad = pl.pallas_call(
        textcnn_kernel,
        out_shape=jax.ShapeDtypeStruct((NUM_CLASSES, rows_pad, LANES),
                                       jnp.float32),
        grid=grid,
        in_specs=[
            pl.BlockSpec((SEQ_LEN, r_tile, LANES), lambda i: (0, i, 0)),
            smem, smem, smem, smem, smem,                      # params
        ],
        out_specs=pl.BlockSpec((NUM_CLASSES, r_tile, LANES),
                               lambda i: (0, i, 0)),
        compiler_params=pltpu.CompilerParams(
            dimension_semantics=("parallel",)),                # v7x megacore
    )(Xp, emb_flat, wc_flat, bc_flat, wf_flat, bf_flat)

    # Unpack the dense layout: [C, rows_pad, 128] -> [b_pad, C] -> [:B]
    return jnp.transpose(out_pad, (1, 2, 0)).reshape(b_pad, NUM_CLASSES)[:B]


def textcnn_reference(X, emb_table, conv_w, conv_b, fc_w, fc_b):
    """Pure-JAX reference mirroring the PyTorch forward (for verification)."""
    B = X.shape[0]
    emb = jnp.take(emb_table, X, axis=0)[:, None, :, :]       # [B,1,S,E]
    outs = []
    for h in range(H_OUT):
        patch = emb[:, 0, h:h + KH, :].reshape(B, PATCH)
        outs.append(patch @ conv_w.reshape(OUT_CH, PATCH).T + conv_b)
    conved = jnp.stack(outs, axis=-1)                          # [B, OC, H_OUT]
    conved = jnp.maximum(conved, 0.0)
    pooled = jnp.max(conved, axis=-1)                          # [B, OC]
    return pooled @ fc_w.T + fc_b


if __name__ == "__main__":
    # Deterministic parameter init (synthetic — not a checkpoint load).
    key = jax.random.PRNGKey(0)
    k_emb, k_cw, k_cb, k_fw, k_fb = jax.random.split(key, 5)
    emb_table = jax.random.normal(k_emb, (vocab_size, EMBED), jnp.float32)
    conv_w = jax.random.normal(k_cw, (OUT_CH, 1, KH, EMBED), jnp.float32) * 0.5
    conv_b = jax.random.normal(k_cb, (OUT_CH,), jnp.float32) * 0.1
    fc_w = jax.random.normal(k_fw, (NUM_CLASSES, OUT_CH), jnp.float32) * 0.5
    fc_b = jax.random.normal(k_fb, (NUM_CLASSES,), jnp.float32) * 0.1

    # Inputs: token ids of the 6 sentences -> X: [6, 3] int32
    X = jnp.array([[word2idx[w] for w in s.split()] for s in sentences],
                  dtype=jnp.int32)

    fwd = jax.jit(textcnn_forward)
    out = jax.block_until_ready(fwd(X, emb_table, conv_w, conv_b, fc_w, fc_b))
    ref = textcnn_reference(X, emb_table, conv_w, conv_b, fc_w, fc_b)
    assert out.shape == (X.shape[0], NUM_CLASSES)
    assert jnp.allclose(out, ref, atol=1e-5, rtol=1e-5), (out, ref)

    # Also exercise the multi-row (R > 1) lane-packed path with a bigger batch.
    k_x = jax.random.fold_in(key, 7)
    Xbig = jax.random.randint(k_x, (200, SEQ_LEN), 0, vocab_size, jnp.int32)
    out_big = jax.block_until_ready(
        fwd(Xbig, emb_table, conv_w, conv_b, fc_w, fc_b))
    ref_big = textcnn_reference(Xbig, emb_table, conv_w, conv_b, fc_w, fc_b)
    assert jnp.allclose(out_big, ref_big, atol=1e-5, rtol=1e-5)

    print("KERNEL_OK")
</pallas_src>

<mosaic_0001>
module attributes {stable_mosaic.version = 11 : i64} {
  func.func @textcnn_kernel(%arg0: i32, %arg1: memref<3x1x128xi32, #tpu.memory_space<vmem>>, %arg2: memref<32xf32, #tpu.memory_space<smem>>, %arg3: memref<12xf32, #tpu.memory_space<smem>>, %arg4: memref<3xf32, #tpu.memory_space<smem>>, %arg5: memref<6xf32, #tpu.memory_space<smem>>, %arg6: memref<2xf32, #tpu.memory_space<smem>>, %arg7: memref<2x1x128xf32, #tpu.memory_space<vmem>>) attributes {dimension_semantics = [#tpu.dimension_semantics<parallel>], iteration_bounds = array<i64: 1>, scalar_prefetch = 0 : i64, scratch_operands = 0 : i64, tpu.core_type = #tpu.core_type<tc>, window_params = [{transform_indices = @transform_0, window_bounds = array<i64: 3, 1, 128>}, {transform_indices = @transform_1, window_bounds = array<i64: 32>}, {transform_indices = @transform_2, window_bounds = array<i64: 12>}, {transform_indices = @transform_3, window_bounds = array<i64: 3>}, {transform_indices = @transform_4, window_bounds = array<i64: 6>}, {transform_indices = @transform_5, window_bounds = array<i64: 2>}, {transform_indices = @transform_6, window_bounds = array<i64: 2, 1, 128>}]} {
    %cst = arith.constant 0.000000e+00 : f32
    %0 = vector.broadcast %cst : f32 to vector<1x128xf32>
    %c0 = arith.constant 0 : index
    %c0_0 = arith.constant 0 : index
    %c0_1 = arith.constant 0 : index
    %1 = vector.load %arg1[%c0, %c0_0, %c0_1] : memref<3x1x128xi32, #tpu.memory_space<vmem>>, vector<1x1x128xi32>
    %2 = vector.shape_cast %1 : vector<1x1x128xi32> to vector<1x128xi32>
    %c1 = arith.constant 1 : index
    %c0_2 = arith.constant 0 : index
    %c0_3 = arith.constant 0 : index
    %3 = vector.load %arg1[%c1, %c0_2, %c0_3] : memref<3x1x128xi32, #tpu.memory_space<vmem>>, vector<1x1x128xi32>
    %4 = vector.shape_cast %3 : vector<1x1x128xi32> to vector<1x128xi32>
    %c2 = arith.constant 2 : index
    %c0_4 = arith.constant 0 : index
    %c0_5 = arith.constant 0 : index
    %5 = vector.load %arg1[%c2, %c0_4, %c0_5] : memref<3x1x128xi32, #tpu.memory_space<vmem>>, vector<1x1x128xi32>
    %6 = vector.shape_cast %5 : vector<1x1x128xi32> to vector<1x128xi32>
    %c0_6 = arith.constant 0 : index
    %7 = memref.load %arg2[%c0_6] : memref<32xf32, #tpu.memory_space<smem>>
    %8 = vector.broadcast %7 : f32 to vector<1x128xf32>
    %9 = arith.addf %0, %8 : vector<1x128xf32>
    %c1_7 = arith.constant 1 : index
    %10 = memref.load %arg2[%c1_7] : memref<32xf32, #tpu.memory_space<smem>>
    %11 = vector.broadcast %10 : f32 to vector<1x128xf32>
    %12 = arith.addf %0, %11 : vector<1x128xf32>
    %c0_i32 = arith.constant 0 : i32
    %13 = vector.broadcast %c0_i32 : i32 to vector<1x128xi32>
    %14 = arith.cmpi eq, %2, %13 : vector<1x128xi32>
    %15 = arith.select %14, %9, %0 : vector<1x128xi1>, vector<1x128xf32>
    %16 = arith.select %14, %12, %0 : vector<1x128xi1>, vector<1x128xf32>
    %c0_i32_8 = arith.constant 0 : i32
    %17 = vector.broadcast %c0_i32_8 : i32 to vector<1x128xi32>
    %18 = arith.cmpi eq, %4, %17 : vector<1x128xi32>
    %19 = arith.select %18, %9, %0 : vector<1x128xi1>, vector<1x128xf32>
    %20 = arith.select %18, %12, %0 : vector<1x128xi1>, vector<1x128xf32>
    %c0_i32_9 = arith.constant 0 : i32
    %21 = vector.broadcast %c0_i32_9 : i32 to vector<1x128xi32>
    %22 = arith.cmpi eq, %6, %21 : vector<1x128xi32>
    %23 = arith.select %22, %9, %0 : vector<1x128xi1>, vector<1x128xf32>
    %24 = arith.select %22, %12, %0 : vector<1x128xi1>, vector<1x128xf32>
    %c2_10 = arith.constant 2 : index
    %25 = memref.load %arg2[%c2_10] : memref<32xf32, #tpu.memory_space<smem>>
    %26 = vector.broadcast %25 : f32 to vector<1x128xf32>
    %27 = arith.addf %0, %26 : vector<1x128xf32>
    %c3 = arith.constant 3 : index
    %28 = memref.load %arg2[%c3] : memref<32xf32, #tpu.memory_space<smem>>
    %29 = vector.broadcast %28 : f32 to vector<1x128xf32>
    %30 = arith.addf %0, %29 : vector<1x128xf32>
    %c1_i32 = arith.constant 1 : i32
    %31 = vector.broadcast %c1_i32 : i32 to vector<1x128xi32>
    %32 = arith.cmpi eq, %2, %31 : vector<1x128xi32>
    %33 = arith.select %32, %27, %15 : vector<1x128xi1>, vector<1x128xf32>
    %34 = arith.select %32, %30, %16 : vector<1x128xi1>, vector<1x128xf32>
    %c1_i32_11 = arith.constant 1 : i32
    %35 = vector.broadcast %c1_i32_11 : i32 to vector<1x128xi32>
    %36 = arith.cmpi eq, %4, %35 : vector<1x128xi32>
    %37 = arith.select %36, %27, %19 : vector<1x128xi1>, vector<1x128xf32>
    %38 = arith.select %36, %30, %20 : vector<1x128xi1>, vector<1x128xf32>
    %c1_i32_12 = arith.constant 1 : i32
    %39 = vector.broadcast %c1_i32_12 : i32 to vector<1x128xi32>
    %40 = arith.cmpi eq, %6, %39 : vector<1x128xi32>
    %41 = arith.select %40, %27, %23 : vector<1x128xi1>, vector<1x128xf32>
    %42 = arith.select %40, %30, %24 : vector<1x128xi1>, vector<1x128xf32>
    %c4 = arith.constant 4 : index
    %43 = memref.load %arg2[%c4] : memref<32xf32, #tpu.memory_space<smem>>
    %44 = vector.broadcast %43 : f32 to vector<1x128xf32>
    %45 = arith.addf %0, %44 : vector<1x128xf32>
    %c5 = arith.constant 5 : index
    %46 = memref.load %arg2[%c5] : memref<32xf32, #tpu.memory_space<smem>>
    %47 = vector.broadcast %46 : f32 to vector<1x128xf32>
    %48 = arith.addf %0, %47 : vector<1x128xf32>
    %c2_i32 = arith.constant 2 : i32
    %49 = vector.broadcast %c2_i32 : i32 to vector<1x128xi32>
    %50 = arith.cmpi eq, %2, %49 : vector<1x128xi32>
    %51 = arith.select %50, %45, %33 : vector<1x128xi1>, vector<1x128xf32>
    %52 = arith.select %50, %48, %34 : vector<1x128xi1>, vector<1x128xf32>
    %c2_i32_13 = arith.constant 2 : i32
    %53 = vector.broadcast %c2_i32_13 : i32 to vector<1x128xi32>
    %54 = arith.cmpi eq, %4, %53 : vector<1x128xi32>
    %55 = arith.select %54, %45, %37 : vector<1x128xi1>, vector<1x128xf32>
    %56 = arith.select %54, %48, %38 : vector<1x128xi1>, vector<1x128xf32>
    %c2_i32_14 = arith.constant 2 : i32
    %57 = vector.broadcast %c2_i32_14 : i32 to vector<1x128xi32>
    %58 = arith.cmpi eq, %6, %57 : vector<1x128xi32>
    %59 = arith.select %58, %45, %41 : vector<1x128xi1>, vector<1x128xf32>
    %60 = arith.select %58, %48, %42 : vector<1x128xi1>, vector<1x128xf32>
    %c6 = arith.constant 6 : index
    %61 = memref.load %arg2[%c6] : memref<32xf32, #tpu.memory_space<smem>>
    %62 = vector.broadcast %61 : f32 to vector<1x128xf32>
    %63 = arith.addf %0, %62 : vector<1x128xf32>
    %c7 = arith.constant 7 : index
    %64 = memref.load %arg2[%c7] : memref<32xf32, #tpu.memory_space<smem>>
    %65 = vector.broadcast %64 : f32 to vector<1x128xf32>
    %66 = arith.addf %0, %65 : vector<1x128xf32>
    %c3_i32 = arith.constant 3 : i32
    %67 = vector.broadcast %c3_i32 : i32 to vector<1x128xi32>
    %68 = arith.cmpi eq, %2, %67 : vector<1x128xi32>
    %69 = arith.select %68, %63, %51 : vector<1x128xi1>, vector<1x128xf32>
    %70 = arith.select %68, %66, %52 : vector<1x128xi1>, vector<1x128xf32>
    %c3_i32_15 = arith.constant 3 : i32
    %71 = vector.broadcast %c3_i32_15 : i32 to vector<1x128xi32>
    %72 = arith.cmpi eq, %4, %71 : vector<1x128xi32>
    %73 = arith.select %72, %63, %55 : vector<1x128xi1>, vector<1x128xf32>
    %74 = arith.select %72, %66, %56 : vector<1x128xi1>, vector<1x128xf32>
    %c3_i32_16 = arith.constant 3 : i32
    %75 = vector.broadcast %c3_i32_16 : i32 to vector<1x128xi32>
    %76 = arith.cmpi eq, %6, %75 : vector<1x128xi32>
    %77 = arith.select %76, %63, %59 : vector<1x128xi1>, vector<1x128xf32>
    %78 = arith.select %76, %66, %60 : vector<1x128xi1>, vector<1x128xf32>
    %c8 = arith.constant 8 : index
    %79 = memref.load %arg2[%c8] : memref<32xf32, #tpu.memory_space<smem>>
    %80 = vector.broadcast %79 : f32 to vector<1x128xf32>
    %81 = arith.addf %0, %80 : vector<1x128xf32>
    %c9 = arith.constant 9 : index
    %82 = memref.load %arg2[%c9] : memref<32xf32, #tpu.memory_space<smem>>
    %83 = vector.broadcast %82 : f32 to vector<1x128xf32>
    %84 = arith.addf %0, %83 : vector<1x128xf32>
    %c4_i32 = arith.constant 4 : i32
    %85 = vector.broadcast %c4_i32 : i32 to vector<1x128xi32>
    %86 = arith.cmpi eq, %2, %85 : vector<1x128xi32>
    %87 = arith.select %86, %81, %69 : vector<1x128xi1>, vector<1x128xf32>
    %88 = arith.select %86, %84, %70 : vector<1x128xi1>, vector<1x128xf32>
    %c4_i32_17 = arith.constant 4 : i32
    %89 = vector.broadcast %c4_i32_17 : i32 to vector<1x128xi32>
    %90 = arith.cmpi eq, %4, %89 : vector<1x128xi32>
    %91 = arith.select %90, %81, %73 : vector<1x128xi1>, vector<1x128xf32>
    %92 = arith.select %90, %84, %74 : vector<1x128xi1>, vector<1x128xf32>
    %c4_i32_18 = arith.constant 4 : i32
    %93 = vector.broadcast %c4_i32_18 : i32 to vector<1x128xi32>
    %94 = arith.cmpi eq, %6, %93 : vector<1x128xi32>
    %95 = arith.select %94, %81, %77 : vector<1x128xi1>, vector<1x128xf32>
    %96 = arith.select %94, %84, %78 : vector<1x128xi1>, vector<1x128xf32>
    %c10 = arith.constant 10 : index
    %97 = memref.load %arg2[%c10] : memref<32xf32, #tpu.memory_space<smem>>
    %98 = vector.broadcast %97 : f32 to vector<1x128xf32>
    %99 = arith.addf %0, %98 : vector<1x128xf32>
    %c11 = arith.constant 11 : index
    %100 = memref.load %arg2[%c11] : memref<32xf32, #tpu.memory_space<smem>>
    %101 = vector.broadcast %100 : f32 to vector<1x128xf32>
    %102 = arith.addf %0, %101 : vector<1x128xf32>
    %c5_i32 = arith.constant 5 : i32
    %103 = vector.broadcast %c5_i32 : i32 to vector<1x128xi32>
    %104 = arith.cmpi eq, %2, %103 : vector<1x128xi32>
    %105 = arith.select %104, %99, %87 : vector<1x128xi1>, vector<1x128xf32>
    %106 = arith.select %104, %102, %88 : vector<1x128xi1>, vector<1x128xf32>
    %c5_i32_19 = arith.constant 5 : i32
    %107 = vector.broadcast %c5_i32_19 : i32 to vector<1x128xi32>
    %108 = arith.cmpi eq, %4, %107 : vector<1x128xi32>
    %109 = arith.select %108, %99, %91 : vector<1x128xi1>, vector<1x128xf32>
    %110 = arith.select %108, %102, %92 : vector<1x128xi1>, vector<1x128xf32>
    %c5_i32_20 = arith.constant 5 : i32
    %111 = vector.broadcast %c5_i32_20 : i32 to vector<1x128xi32>
    %112 = arith.cmpi eq, %6, %111 : vector<1x128xi32>
    %113 = arith.select %112, %99, %95 : vector<1x128xi1>, vector<1x128xf32>
    %114 = arith.select %112, %102, %96 : vector<1x128xi1>, vector<1x128xf32>
    %c12 = arith.constant 12 : index
    %115 = memref.load %arg2[%c12] : memref<32xf32, #tpu.memory_space<smem>>
    %116 = vector.broadcast %115 : f32 to vector<1x128xf32>
    %117 = arith.addf %0, %116 : vector<1x128xf32>
    %c13 = arith.constant 13 : index
    %118 = memref.load %arg2[%c13] : memref<32xf32, #tpu.memory_space<smem>>
    %119 = vector.broadcast %118 : f32 to vector<1x128xf32>
    %120 = arith.addf %0, %119 : vector<1x128xf32>
    %c6_i32 = arith.constant 6 : i32
    %121 = vector.broadcast %c6_i32 : i32 to vector<1x128xi32>
    %122 = arith.cmpi eq, %2, %121 : vector<1x128xi32>
    %123 = arith.select %122, %117, %105 : vector<1x128xi1>, vector<1x128xf32>
    %124 = arith.select %122, %120, %106 : vector<1x128xi1>, vector<1x128xf32>
    %c6_i32_21 = arith.constant 6 : i32
    %125 = vector.broadcast %c6_i32_21 : i32 to vector<1x128xi32>
    %126 = arith.cmpi eq, %4, %125 : vector<1x128xi32>
    %127 = arith.select %126, %117, %109 : vector<1x128xi1>, vector<1x128xf32>
    %128 = arith.select %126, %120, %110 : vector<1x128xi1>, vector<1x128xf32>
    %c6_i32_22 = arith.constant 6 : i32
    %129 = vector.broadcast %c6_i32_22 : i32 to vector<1x128xi32>
    %130 = arith.cmpi eq, %6, %129 : vector<1x128xi32>
    %131 = arith.select %130, %117, %113 : vector<1x128xi1>, vector<1x128xf32>
    %132 = arith.select %130, %120, %114 : vector<1x128xi1>, vector<1x128xf32>
    %c14 = arith.constant 14 : index
    %133 = memref.load %arg2[%c14] : memref<32xf32, #tpu.memory_space<smem>>
    %134 = vector.broadcast %133 : f32 to vector<1x128xf32>
    %135 = arith.addf %0, %134 : vector<1x128xf32>
    %c15 = arith.constant 15 : index
    %136 = memref.load %arg2[%c15] : memref<32xf32, #tpu.memory_space<smem>>
    %137 = vector.broadcast %136 : f32 to vector<1x128xf32>
    %138 = arith.addf %0, %137 : vector<1x128xf32>
    %c7_i32 = arith.constant 7 : i32
    %139 = vector.broadcast %c7_i32 : i32 to vector<1x128xi32>
    %140 = arith.cmpi eq, %2, %139 : vector<1x128xi32>
    %141 = arith.select %140, %135, %123 : vector<1x128xi1>, vector<1x128xf32>
    %142 = arith.select %140, %138, %124 : vector<1x128xi1>, vector<1x128xf32>
    %c7_i32_23 = arith.constant 7 : i32
    %143 = vector.broadcast %c7_i32_23 : i32 to vector<1x128xi32>
    %144 = arith.cmpi eq, %4, %143 : vector<1x128xi32>
    %145 = arith.select %144, %135, %127 : vector<1x128xi1>, vector<1x128xf32>
    %146 = arith.select %144, %138, %128 : vector<1x128xi1>, vector<1x128xf32>
    %c7_i32_24 = arith.constant 7 : i32
    %147 = vector.broadcast %c7_i32_24 : i32 to vector<1x128xi32>
    %148 = arith.cmpi eq, %6, %147 : vector<1x128xi32>
    %149 = arith.select %148, %135, %131 : vector<1x128xi1>, vector<1x128xf32>
    %150 = arith.select %148, %138, %132 : vector<1x128xi1>, vector<1x128xf32>
    %c16 = arith.constant 16 : index
    %151 = memref.load %arg2[%c16] : memref<32xf32, #tpu.memory_space<smem>>
    %152 = vector.broadcast %151 : f32 to vector<1x128xf32>
    %153 = arith.addf %0, %152 : vector<1x128xf32>
    %c17 = arith.constant 17 : index
    %154 = memref.load %arg2[%c17] : memref<32xf32, #tpu.memory_space<smem>>
    %155 = vector.broadcast %154 : f32 to vector<1x128xf32>
    %156 = arith.addf %0, %155 : vector<1x128xf32>
    %c8_i32 = arith.constant 8 : i32
    %157 = vector.broadcast %c8_i32 : i32 to vector<1x128xi32>
    %158 = arith.cmpi eq, %2, %157 : vector<1x128xi32>
    %159 = arith.select %158, %153, %141 : vector<1x128xi1>, vector<1x128xf32>
    %160 = arith.select %158, %156, %142 : vector<1x128xi1>, vector<1x128xf32>
    %c8_i32_25 = arith.constant 8 : i32
    %161 = vector.broadcast %c8_i32_25 : i32 to vector<1x128xi32>
    %162 = arith.cmpi eq, %4, %161 : vector<1x128xi32>
    %163 = arith.select %162, %153, %145 : vector<1x128xi1>, vector<1x128xf32>
    %164 = arith.select %162, %156, %146 : vector<1x128xi1>, vector<1x128xf32>
    %c8_i32_26 = arith.constant 8 : i32
    %165 = vector.broadcast %c8_i32_26 : i32 to vector<1x128xi32>
    %166 = arith.cmpi eq, %6, %165 : vector<1x128xi32>
    %167 = arith.select %166, %153, %149 : vector<1x128xi1>, vector<1x128xf32>
    %168 = arith.select %166, %156, %150 : vector<1x128xi1>, vector<1x128xf32>
    %c18 = arith.constant 18 : index
    %169 = memref.load %arg2[%c18] : memref<32xf32, #tpu.memory_space<smem>>
    %170 = vector.broadcast %169 : f32 to vector<1x128xf32>
    %171 = arith.addf %0, %170 : vector<1x128xf32>
    %c19 = arith.constant 19 : index
    %172 = memref.load %arg2[%c19] : memref<32xf32, #tpu.memory_space<smem>>
    %173 = vector.broadcast %172 : f32 to vector<1x128xf32>
    %174 = arith.addf %0, %173 : vector<1x128xf32>
    %c9_i32 = arith.constant 9 : i32
    %175 = vector.broadcast %c9_i32 : i32 to vector<1x128xi32>
    %176 = arith.cmpi eq, %2, %175 : vector<1x128xi32>
    %177 = arith.select %176, %171, %159 : vector<1x128xi1>, vector<1x128xf32>
    %178 = arith.select %176, %174, %160 : vector<1x128xi1>, vector<1x128xf32>
    %c9_i32_27 = arith.constant 9 : i32
    %179 = vector.broadcast %c9_i32_27 : i32 to vector<1x128xi32>
    %180 = arith.cmpi eq, %4, %179 : vector<1x128xi32>
    %181 = arith.select %180, %171, %163 : vector<1x128xi1>, vector<1x128xf32>
    %182 = arith.select %180, %174, %164 : vector<1x128xi1>, vector<1x128xf32>
    %c9_i32_28 = arith.constant 9 : i32
    %183 = vector.broadcast %c9_i32_28 : i32 to vector<1x128xi32>
    %184 = arith.cmpi eq, %6, %183 : vector<1x128xi32>
    %185 = arith.select %184, %171, %167 : vector<1x128xi1>, vector<1x128xf32>
    %186 = arith.select %184, %174, %168 : vector<1x128xi1>, vector<1x128xf32>
    %c20 = arith.constant 20 : index
    %187 = memref.load %arg2[%c20] : memref<32xf32, #tpu.memory_space<smem>>
    %188 = vector.broadcast %187 : f32 to vector<1x128xf32>
    %189 = arith.addf %0, %188 : vector<1x128xf32>
    %c21 = arith.constant 21 : index
    %190 = memref.load %arg2[%c21] : memref<32xf32, #tpu.memory_space<smem>>
    %191 = vector.broadcast %190 : f32 to vector<1x128xf32>
    %192 = arith.addf %0, %191 : vector<1x128xf32>
    %c10_i32 = arith.constant 10 : i32
    %193 = vector.broadcast %c10_i32 : i32 to vector<1x128xi32>
    %194 = arith.cmpi eq, %2, %193 : vector<1x128xi32>
    %195 = arith.select %194, %189, %177 : vector<1x128xi1>, vector<1x128xf32>
    %196 = arith.select %194, %192, %178 : vector<1x128xi1>, vector<1x128xf32>
    %c10_i32_29 = arith.constant 10 : i32
    %197 = vector.broadcast %c10_i32_29 : i32 to vector<1x128xi32>
    %198 = arith.cmpi eq, %4, %197 : vector<1x128xi32>
    %199 = arith.select %198, %189, %181 : vector<1x128xi1>, vector<1x128xf32>
    %200 = arith.select %198, %192, %182 : vector<1x128xi1>, vector<1x128xf32>
    %c10_i32_30 = arith.constant 10 : i32
    %201 = vector.broadcast %c10_i32_30 : i32 to vector<1x128xi32>
    %202 = arith.cmpi eq, %6, %201 : vector<1x128xi32>
    %203 = arith.select %202, %189, %185 : vector<1x128xi1>, vector<1x128xf32>
    %204 = arith.select %202, %192, %186 : vector<1x128xi1>, vector<1x128xf32>
    %c22 = arith.constant 22 : index
    %205 = memref.load %arg2[%c22] : memref<32xf32, #tpu.memory_space<smem>>
    %206 = vector.broadcast %205 : f32 to vector<1x128xf32>
    %207 = arith.addf %0, %206 : vector<1x128xf32>
    %c23 = arith.constant 23 : index
    %208 = memref.load %arg2[%c23] : memref<32xf32, #tpu.memory_space<smem>>
    %209 = vector.broadcast %208 : f32 to vector<1x128xf32>
    %210 = arith.addf %0, %209 : vector<1x128xf32>
    %c11_i32 = arith.constant 11 : i32
    %211 = vector.broadcast %c11_i32 : i32 to vector<1x128xi32>
    %212 = arith.cmpi eq, %2, %211 : vector<1x128xi32>
    %213 = arith.select %212, %207, %195 : vector<1x128xi1>, vector<1x128xf32>
    %214 = arith.select %212, %210, %196 : vector<1x128xi1>, vector<1x128xf32>
    %c11_i32_31 = arith.constant 11 : i32
    %215 = vector.broadcast %c11_i32_31 : i32 to vector<1x128xi32>
    %216 = arith.cmpi eq, %4, %215 : vector<1x128xi32>
    %217 = arith.select %216, %207, %199 : vector<1x128xi1>, vector<1x128xf32>
    %218 = arith.select %216, %210, %200 : vector<1x128xi1>, vector<1x128xf32>
    %c11_i32_32 = arith.constant 11 : i32
    %219 = vector.broadcast %c11_i32_32 : i32 to vector<1x128xi32>
    %220 = arith.cmpi eq, %6, %219 : vector<1x128xi32>
    %221 = arith.select %220, %207, %203 : vector<1x128xi1>, vector<1x128xf32>
    %222 = arith.select %220, %210, %204 : vector<1x128xi1>, vector<1x128xf32>
    %c24 = arith.constant 24 : index
    %223 = memref.load %arg2[%c24] : memref<32xf32, #tpu.memory_space<smem>>
    %224 = vector.broadcast %223 : f32 to vector<1x128xf32>
    %225 = arith.addf %0, %224 : vector<1x128xf32>
    %c25 = arith.constant 25 : index
    %226 = memref.load %arg2[%c25] : memref<32xf32, #tpu.memory_space<smem>>
    %227 = vector.broadcast %226 : f32 to vector<1x128xf32>
    %228 = arith.addf %0, %227 : vector<1x128xf32>
    %c12_i32 = arith.constant 12 : i32
    %229 = vector.broadcast %c12_i32 : i32 to vector<1x128xi32>
    %230 = arith.cmpi eq, %2, %229 : vector<1x128xi32>
    %231 = arith.select %230, %225, %213 : vector<1x128xi1>, vector<1x128xf32>
    %232 = arith.select %230, %228, %214 : vector<1x128xi1>, vector<1x128xf32>
    %c12_i32_33 = arith.constant 12 : i32
    %233 = vector.broadcast %c12_i32_33 : i32 to vector<1x128xi32>
    %234 = arith.cmpi eq, %4, %233 : vector<1x128xi32>
    %235 = arith.select %234, %225, %217 : vector<1x128xi1>, vector<1x128xf32>
    %236 = arith.select %234, %228, %218 : vector<1x128xi1>, vector<1x128xf32>
    %c12_i32_34 = arith.constant 12 : i32
    %237 = vector.broadcast %c12_i32_34 : i32 to vector<1x128xi32>
    %238 = arith.cmpi eq, %6, %237 : vector<1x128xi32>
    %239 = arith.select %238, %225, %221 : vector<1x128xi1>, vector<1x128xf32>
    %240 = arith.select %238, %228, %222 : vector<1x128xi1>, vector<1x128xf32>
    %c26 = arith.constant 26 : index
    %241 = memref.load %arg2[%c26] : memref<32xf32, #tpu.memory_space<smem>>
    %242 = vector.broadcast %241 : f32 to vector<1x128xf32>
    %243 = arith.addf %0, %242 : vector<1x128xf32>
    %c27 = arith.constant 27 : index
    %244 = memref.load %arg2[%c27] : memref<32xf32, #tpu.memory_space<smem>>
    %245 = vector.broadcast %244 : f32 to vector<1x128xf32>
    %246 = arith.addf %0, %245 : vector<1x128xf32>
    %c13_i32 = arith.constant 13 : i32
    %247 = vector.broadcast %c13_i32 : i32 to vector<1x128xi32>
    %248 = arith.cmpi eq, %2, %247 : vector<1x128xi32>
    %249 = arith.select %248, %243, %231 : vector<1x128xi1>, vector<1x128xf32>
    %250 = arith.select %248, %246, %232 : vector<1x128xi1>, vector<1x128xf32>
    %c13_i32_35 = arith.constant 13 : i32
    %251 = vector.broadcast %c13_i32_35 : i32 to vector<1x128xi32>
    %252 = arith.cmpi eq, %4, %251 : vector<1x128xi32>
    %253 = arith.select %252, %243, %235 : vector<1x128xi1>, vector<1x128xf32>
    %254 = arith.select %252, %246, %236 : vector<1x128xi1>, vector<1x128xf32>
    %c13_i32_36 = arith.constant 13 : i32
    %255 = vector.broadcast %c13_i32_36 : i32 to vector<1x128xi32>
    %256 = arith.cmpi eq, %6, %255 : vector<1x128xi32>
    %257 = arith.select %256, %243, %239 : vector<1x128xi1>, vector<1x128xf32>
    %258 = arith.select %256, %246, %240 : vector<1x128xi1>, vector<1x128xf32>
    %c28 = arith.constant 28 : index
    %259 = memref.load %arg2[%c28] : memref<32xf32, #tpu.memory_space<smem>>
    %260 = vector.broadcast %259 : f32 to vector<1x128xf32>
    %261 = arith.addf %0, %260 : vector<1x128xf32>
    %c29 = arith.constant 29 : index
    %262 = memref.load %arg2[%c29] : memref<32xf32, #tpu.memory_space<smem>>
    %263 = vector.broadcast %262 : f32 to vector<1x128xf32>
    %264 = arith.addf %0, %263 : vector<1x128xf32>
    %c14_i32 = arith.constant 14 : i32
    %265 = vector.broadcast %c14_i32 : i32 to vector<1x128xi32>
    %266 = arith.cmpi eq, %2, %265 : vector<1x128xi32>
    %267 = arith.select %266, %261, %249 : vector<1x128xi1>, vector<1x128xf32>
    %268 = arith.select %266, %264, %250 : vector<1x128xi1>, vector<1x128xf32>
    %c14_i32_37 = arith.constant 14 : i32
    %269 = vector.broadcast %c14_i32_37 : i32 to vector<1x128xi32>
    %270 = arith.cmpi eq, %4, %269 : vector<1x128xi32>
    %271 = arith.select %270, %261, %253 : vector<1x128xi1>, vector<1x128xf32>
    %272 = arith.select %270, %264, %254 : vector<1x128xi1>, vector<1x128xf32>
    %c14_i32_38 = arith.constant 14 : i32
    %273 = vector.broadcast %c14_i32_38 : i32 to vector<1x128xi32>
    %274 = arith.cmpi eq, %6, %273 : vector<1x128xi32>
    %275 = arith.select %274, %261, %257 : vector<1x128xi1>, vector<1x128xf32>
    %276 = arith.select %274, %264, %258 : vector<1x128xi1>, vector<1x128xf32>
    %c30 = arith.constant 30 : index
    %277 = memref.load %arg2[%c30] : memref<32xf32, #tpu.memory_space<smem>>
    %278 = vector.broadcast %277 : f32 to vector<1x128xf32>
    %279 = arith.addf %0, %278 : vector<1x128xf32>
    %c31 = arith.constant 31 : index
    %280 = memref.load %arg2[%c31] : memref<32xf32, #tpu.memory_space<smem>>
    %281 = vector.broadcast %280 : f32 to vector<1x128xf32>
    %282 = arith.addf %0, %281 : vector<1x128xf32>
    %c15_i32 = arith.constant 15 : i32
    %283 = vector.broadcast %c15_i32 : i32 to vector<1x128xi32>
    %284 = arith.cmpi eq, %2, %283 : vector<1x128xi32>
    %285 = arith.select %284, %279, %267 : vector<1x128xi1>, vector<1x128xf32>
    %286 = arith.select %284, %282, %268 : vector<1x128xi1>, vector<1x128xf32>
    %c15_i32_39 = arith.constant 15 : i32
    %287 = vector.broadcast %c15_i32_39 : i32 to vector<1x128xi32>
    %288 = arith.cmpi eq, %4, %287 : vector<1x128xi32>
    %289 = arith.select %288, %279, %271 : vector<1x128xi1>, vector<1x128xf32>
    %290 = arith.select %288, %282, %272 : vector<1x128xi1>, vector<1x128xf32>
    %c15_i32_40 = arith.constant 15 : i32
    %291 = vector.broadcast %c15_i32_40 : i32 to vector<1x128xi32>
    %292 = arith.cmpi eq, %6, %291 : vector<1x128xi32>
    %293 = arith.select %292, %279, %275 : vector<1x128xi1>, vector<1x128xf32>
    %294 = arith.select %292, %282, %276 : vector<1x128xi1>, vector<1x128xf32>
    %c0_41 = arith.constant 0 : index
    %295 = memref.load %arg3[%c0_41] : memref<12xf32, #tpu.memory_space<smem>>
    %c1_42 = arith.constant 1 : index
    %296 = memref.load %arg3[%c1_42] : memref<12xf32, #tpu.memory_space<smem>>
    %c2_43 = arith.constant 2 : index
    %297 = memref.load %arg3[%c2_43] : memref<12xf32, #tpu.memory_space<smem>>
    %c3_44 = arith.constant 3 : index
    %298 = memref.load %arg3[%c3_44] : memref<12xf32, #tpu.memory_space<smem>>
    %c4_45 = arith.constant 4 : index
    %299 = memref.load %arg3[%c4_45] : memref<12xf32, #tpu.memory_space<smem>>
    %c5_46 = arith.constant 5 : index
    %300 = memref.load %arg3[%c5_46] : memref<12xf32, #tpu.memory_space<smem>>
    %c6_47 = arith.constant 6 : index
    %301 = memref.load %arg3[%c6_47] : memref<12xf32, #tpu.memory_space<smem>>
    %c7_48 = arith.constant 7 : index
    %302 = memref.load %arg3[%c7_48] : memref<12xf32, #tpu.memory_space<smem>>
    %c8_49 = arith.constant 8 : index
    %303 = memref.load %arg3[%c8_49] : memref<12xf32, #tpu.memory_space<smem>>
    %c9_50 = arith.constant 9 : index
    %304 = memref.load %arg3[%c9_50] : memref<12xf32, #tpu.memory_space<smem>>
    %c10_51 = arith.constant 10 : index
    %305 = memref.load %arg3[%c10_51] : memref<12xf32, #tpu.memory_space<smem>>
    %c11_52 = arith.constant 11 : index
    %306 = memref.load %arg3[%c11_52] : memref<12xf32, #tpu.memory_space<smem>>
    %c0_53 = arith.constant 0 : index
    %307 = memref.load %arg4[%c0_53] : memref<3xf32, #tpu.memory_space<smem>>
    %308 = vector.broadcast %307 : f32 to vector<1x128xf32>
    %309 = arith.addf %0, %308 : vector<1x128xf32>
    %310 = vector.broadcast %295 : f32 to vector<1x128xf32>
    %311 = arith.mulf %285, %310 : vector<1x128xf32>
    %312 = arith.addf %309, %311 : vector<1x128xf32>
    %313 = vector.broadcast %296 : f32 to vector<1x128xf32>
    %314 = arith.mulf %286, %313 : vector<1x128xf32>
    %315 = arith.addf %312, %314 : vector<1x128xf32>
    %316 = vector.broadcast %297 : f32 to vector<1x128xf32>
    %317 = arith.mulf %289, %316 : vector<1x128xf32>
    %318 = arith.addf %315, %317 : vector<1x128xf32>
    %319 = vector.broadcast %298 : f32 to vector<1x128xf32>
    %320 = arith.mulf %290, %319 : vector<1x128xf32>
    %321 = arith.addf %318, %320 : vector<1x128xf32>
    %cst_54 = arith.constant 0.000000e+00 : f32
    %322 = vector.broadcast %cst_54 : f32 to vector<1x128xf32>
    %323 = arith.maximumf %321, %322 : vector<1x128xf32>
    %324 = vector.broadcast %295 : f32 to vector<1x128xf32>
    %325 = arith.mulf %289, %324 : vector<1x128xf32>
    %326 = arith.addf %309, %325 : vector<1x128xf32>
    %327 = vector.broadcast %296 : f32 to vector<1x128xf32>
    %328 = arith.mulf %290, %327 : vector<1x128xf32>
    %329 = arith.addf %326, %328 : vector<1x128xf32>
    %330 = vector.broadcast %297 : f32 to vector<1x128xf32>
    %331 = arith.mulf %293, %330 : vector<1x128xf32>
    %332 = arith.addf %329, %331 : vector<1x128xf32>
    %333 = vector.broadcast %298 : f32 to vector<1x128xf32>
    %334 = arith.mulf %294, %333 : vector<1x128xf32>
    %335 = arith.addf %332, %334 : vector<1x128xf32>
    %cst_55 = arith.constant 0.000000e+00 : f32
    %336 = vector.broadcast %cst_55 : f32 to vector<1x128xf32>
    %337 = arith.maximumf %335, %336 : vector<1x128xf32>
    %338 = arith.maximumf %323, %337 : vector<1x128xf32>
    %c1_56 = arith.constant 1 : index
    %339 = memref.load %arg4[%c1_56] : memref<3xf32, #tpu.memory_space<smem>>
    %340 = vector.broadcast %339 : f32 to vector<1x128xf32>
    %341 = arith.addf %0, %340 : vector<1x128xf32>
    %342 = vector.broadcast %299 : f32 to vector<1x128xf32>
    %343 = arith.mulf %285, %342 : vector<1x128xf32>
    %344 = arith.addf %341, %343 : vector<1x128xf32>
    %345 = vector.broadcast %300 : f32 to vector<1x128xf32>
    %346 = arith.mulf %286, %345 : vector<1x128xf32>
    %347 = arith.addf %344, %346 : vector<1x128xf32>
    %348 = vector.broadcast %301 : f32 to vector<1x128xf32>
    %349 = arith.mulf %289, %348 : vector<1x128xf32>
    %350 = arith.addf %347, %349 : vector<1x128xf32>
    %351 = vector.broadcast %302 : f32 to vector<1x128xf32>
    %352 = arith.mulf %290, %351 : vector<1x128xf32>
    %353 = arith.addf %350, %352 : vector<1x128xf32>
    %cst_57 = arith.constant 0.000000e+00 : f32
    %354 = vector.broadcast %cst_57 : f32 to vector<1x128xf32>
    %355 = arith.maximumf %353, %354 : vector<1x128xf32>
    %356 = vector.broadcast %299 : f32 to vector<1x128xf32>
    %357 = arith.mulf %289, %356 : vector<1x128xf32>
    %358 = arith.addf %341, %357 : vector<1x128xf32>
    %359 = vector.broadcast %300 : f32 to vector<1x128xf32>
    %360 = arith.mulf %290, %359 : vector<1x128xf32>
    %361 = arith.addf %358, %360 : vector<1x128xf32>
    %362 = vector.broadcast %301 : f32 to vector<1x128xf32>
    %363 = arith.mulf %293, %362 : vector<1x128xf32>
    %364 = arith.addf %361, %363 : vector<1x128xf32>
    %365 = vector.broadcast %302 : f32 to vector<1x128xf32>
    %366 = arith.mulf %294, %365 : vector<1x128xf32>
    %367 = arith.addf %364, %366 : vector<1x128xf32>
    %cst_58 = arith.constant 0.000000e+00 : f32
    %368 = vector.broadcast %cst_58 : f32 to vector<1x128xf32>
    %369 = arith.maximumf %367, %368 : vector<1x128xf32>
    %370 = arith.maximumf %355, %369 : vector<1x128xf32>
    %c2_59 = arith.constant 2 : index
    %371 = memref.load %arg4[%c2_59] : memref<3xf32, #tpu.memory_space<smem>>
    %372 = vector.broadcast %371 : f32 to vector<1x128xf32>
    %373 = arith.addf %0, %372 : vector<1x128xf32>
    %374 = vector.broadcast %303 : f32 to vector<1x128xf32>
    %375 = arith.mulf %285, %374 : vector<1x128xf32>
    %376 = arith.addf %373, %375 : vector<1x128xf32>
    %377 = vector.broadcast %304 : f32 to vector<1x128xf32>
    %378 = arith.mulf %286, %377 : vector<1x128xf32>
    %379 = arith.addf %376, %378 : vector<1x128xf32>
    %380 = vector.broadcast %305 : f32 to vector<1x128xf32>
    %381 = arith.mulf %289, %380 : vector<1x128xf32>
    %382 = arith.addf %379, %381 : vector<1x128xf32>
    %383 = vector.broadcast %306 : f32 to vector<1x128xf32>
    %384 = arith.mulf %290, %383 : vector<1x128xf32>
    %385 = arith.addf %382, %384 : vector<1x128xf32>
    %cst_60 = arith.constant 0.000000e+00 : f32
    %386 = vector.broadcast %cst_60 : f32 to vector<1x128xf32>
    %387 = arith.maximumf %385, %386 : vector<1x128xf32>
    %388 = vector.broadcast %303 : f32 to vector<1x128xf32>
    %389 = arith.mulf %289, %388 : vector<1x128xf32>
    %390 = arith.addf %373, %389 : vector<1x128xf32>
    %391 = vector.broadcast %304 : f32 to vector<1x128xf32>
    %392 = arith.mulf %290, %391 : vector<1x128xf32>
    %393 = arith.addf %390, %392 : vector<1x128xf32>
    %394 = vector.broadcast %305 : f32 to vector<1x128xf32>
    %395 = arith.mulf %293, %394 : vector<1x128xf32>
    %396 = arith.addf %393, %395 : vector<1x128xf32>
    %397 = vector.broadcast %306 : f32 to vector<1x128xf32>
    %398 = arith.mulf %294, %397 : vector<1x128xf32>
    %399 = arith.addf %396, %398 : vector<1x128xf32>
    %cst_61 = arith.constant 0.000000e+00 : f32
    %400 = vector.broadcast %cst_61 : f32 to vector<1x128xf32>
    %401 = arith.maximumf %399, %400 : vector<1x128xf32>
    %402 = arith.maximumf %387, %401 : vector<1x128xf32>
    %c0_62 = arith.constant 0 : index
    %403 = memref.load %arg5[%c0_62] : memref<6xf32, #tpu.memory_space<smem>>
    %c1_63 = arith.constant 1 : index
    %404 = memref.load %arg5[%c1_63] : memref<6xf32, #tpu.memory_space<smem>>
    %c2_64 = arith.constant 2 : index
    %405 = memref.load %arg5[%c2_64] : memref<6xf32, #tpu.memory_space<smem>>
    %c3_65 = arith.constant 3 : index
    %406 = memref.load %arg5[%c3_65] : memref<6xf32, #tpu.memory_space<smem>>
    %c4_66 = arith.constant 4 : index
    %407 = memref.load %arg5[%c4_66] : memref<6xf32, #tpu.memory_space<smem>>
    %c5_67 = arith.constant 5 : index
    %408 = memref.load %arg5[%c5_67] : memref<6xf32, #tpu.memory_space<smem>>
    %c0_68 = arith.constant 0 : index
    %409 = memref.load %arg6[%c0_68] : memref<2xf32, #tpu.memory_space<smem>>
    %410 = vector.broadcast %409 : f32 to vector<1x128xf32>
    %411 = arith.addf %0, %410 : vector<1x128xf32>
    %412 = vector.broadcast %403 : f32 to vector<1x128xf32>
    %413 = arith.mulf %338, %412 : vector<1x128xf32>
    %414 = arith.addf %411, %413 : vector<1x128xf32>
    %415 = vector.broadcast %404 : f32 to vector<1x128xf32>
    %416 = arith.mulf %370, %415 : vector<1x128xf32>
    %417 = arith.addf %414, %416 : vector<1x128xf32>
    %418 = vector.broadcast %405 : f32 to vector<1x128xf32>
    %419 = arith.mulf %402, %418 : vector<1x128xf32>
    %420 = arith.addf %417, %419 : vector<1x128xf32>
    %c0_69 = arith.constant 0 : index
    %c0_70 = arith.constant 0 : index
    %c0_71 = arith.constant 0 : index
    %421 = vector.load %arg7[%c0_69, %c0_70, %c0_71] : memref<2x1x128xf32, #tpu.memory_space<vmem>>, vector<1x1x128xf32>
    %422 = vector.shape_cast %421 : vector<1x1x128xf32> to vector<1x128xf32>
    %423 = vector.shape_cast %420 : vector<1x128xf32> to vector<1x1x128xf32>
    tpu.vector_store %arg7[%c0_69, %c0_70, %c0_71], %423 {strides = array<i32>} : memref<2x1x128xf32, #tpu.memory_space<vmem>>, vector<1x1x128xf32>,
    %c1_72 = arith.constant 1 : index
    %424 = memref.load %arg6[%c1_72] : memref<2xf32, #tpu.memory_space<smem>>
    %425 = vector.broadcast %424 : f32 to vector<1x128xf32>
    %426 = arith.addf %0, %425 : vector<1x128xf32>
    %427 = vector.broadcast %406 : f32 to vector<1x128xf32>
    %428 = arith.mulf %338, %427 : vector<1x128xf32>
    %429 = arith.addf %426, %428 : vector<1x128xf32>
    %430 = vector.broadcast %407 : f32 to vector<1x128xf32>
    %431 = arith.mulf %370, %430 : vector<1x128xf32>
    %432 = arith.addf %429, %431 : vector<1x128xf32>
    %433 = vector.broadcast %408 : f32 to vector<1x128xf32>
    %434 = arith.mulf %402, %433 : vector<1x128xf32>
    %435 = arith.addf %432, %434 : vector<1x128xf32>
    %c1_73 = arith.constant 1 : index
    %c0_74 = arith.constant 0 : index
    %c0_75 = arith.constant 0 : index
    %436 = vector.load %arg7[%c1_73, %c0_74, %c0_75] : memref<2x1x128xf32, #tpu.memory_space<vmem>>, vector<1x1x128xf32>
    %437 = vector.shape_cast %436 : vector<1x1x128xf32> to vector<1x128xf32>
    %438 = vector.shape_cast %435 : vector<1x128xf32> to vector<1x1x128xf32>
    tpu.vector_store %arg7[%c1_73, %c0_74, %c0_75], %438 {strides = array<i32>} : memref<2x1x128xf32, #tpu.memory_space<vmem>>, vector<1x1x128xf32>,
    return
  }
  func.func @transform_0(%arg0: i32) -> (i32, i32, i32) {
    %c0_i32 = arith.constant 0 : i32
    %c0_i32_0 = arith.constant 0 : i32
    %c0_i32_1 = arith.constant 0 : i32
    return %c0_i32, %arg0, %c0_i32_0 : i32, i32, i32
  }
  func.func @transform_1(%arg0: i32) -> i32 {
    %c0_i32 = arith.constant 0 : i32
    %c0_i32_0 = arith.constant 0 : i32
    return %c0_i32 : i32
  }
  func.func @transform_2(%arg0: i32) -> i32 {
    %c0_i32 = arith.constant 0 : i32
    %c0_i32_0 = arith.constant 0 : i32
    return %c0_i32 : i32
  }
  func.func @transform_3(%arg0: i32) -> i32 {
    %c0_i32 = arith.constant 0 : i32
    %c0_i32_0 = arith.constant 0 : i32
    return %c0_i32 : i32
  }
  func.func @transform_4(%arg0: i32) -> i32 {
    %c0_i32 = arith.constant 0 : i32
    %c0_i32_0 = arith.constant 0 : i32
    return %c0_i32 : i32
  }
  func.func @transform_5(%arg0: i32) -> i32 {
    %c0_i32 = arith.constant 0 : i32
    %c0_i32_0 = arith.constant 0 : i32
    return %c0_i32 : i32
  }
  func.func @transform_6(%arg0: i32) -> (i32, i32, i32) {
    %c0_i32 = arith.constant 0 : i32
    %c0_i32_0 = arith.constant 0 : i32
    %c0_i32_1 = arith.constant 0 : i32
    return %c0_i32, %arg0, %c0_i32_0 : i32, i32, i32
  }
}

</mosaic_0001>

<llo_original>
// kernel: textcnn_forward.1
$region0: #{textcnn_forward.1}
  #allocation0 [shape = 'u32[]', space=smem, size = 0x4, offset = 0x4, fixed_abs, tag = 'smem constant byte address 0x4 - core index']
  #allocation1 [shape = 'u32[144,128]{1,0:T(1,128)}', space=vmem, size = 0x12000, scoped, tag = 'internal scratch']
  %s0 = inlined_call_operand.vmem [shape: s32[3,1,128], index: 0, kind: input, shape index: {}]
  %s1 = inlined_call_operand.vmem [shape: f32[32], index: 1, kind: input, shape index: {}]
  %s2 = inlined_call_operand.vmem [shape: f32[12], index: 2, kind: input, shape index: {}]
  %s3 = inlined_call_operand.vmem [shape: f32[3], index: 3, kind: input, shape index: {}]
  %s4 = inlined_call_operand.vmem [shape: f32[6], index: 4, kind: input, shape index: {}]
  %s5 = inlined_call_operand.vmem [shape: f32[2], index: 5, kind: input, shape index: {}]
  %s6 = inlined_call_operand.hbm [shape: f32[2,1,128], index: 6, kind: output, shape index: {}]
  %s7 = sld [smem:[#allocation0]]
  $region54: #{textcnn_forward.1} parent=0
    _
  %s9 = ssub.s32 1, %s7
  %s10 = scalar_select 0, %s9, %s7
  $region1: #{textcnn_forward.1} parent=0
    #allocation2 [shape = 'u8[512]{0}', space=smem, size = 0x200, scoped, tag = 'input window, operand 1, single buffered']
    #allocation3 [shape = 's32[1]{0}', space=sflag, size = 0x4, scoped, tag = 'scoped memory for textcnn_forward.1']
    #allocation4 [shape = 's32[1]{0}', space=sflag, size = 0x4, scoped, tag = 'scoped memory for textcnn_forward.1']
    #allocation5 [shape = 'u8[512]{0}', space=smem, size = 0x200, scoped, tag = 'input window, operand 2, single buffered']
    #allocation6 [shape = 's32[1]{0}', space=sflag, size = 0x4, scoped, tag = 'scoped memory for textcnn_forward.1']
    #allocation7 [shape = 'u8[512]{0}', space=smem, size = 0x200, scoped, tag = 'input window, operand 3, single buffered']
    #allocation8 [shape = 'u8[512]{0}', space=smem, size = 0x200, scoped, tag = 'input window, operand 4, single buffered']
    #allocation9 [shape = 's32[1]{0}', space=sflag, size = 0x4, scoped, tag = 'scoped memory for textcnn_forward.1']
    #allocation10 [shape = 'u8[512]{0}', space=smem, size = 0x200, scoped, tag = 'input window, operand 5, single buffered']
    #allocation11 [shape = 'u8[1024]{0}', space=vmem, size = 0x400, scoped, tag = 'output window, operand 0, single buffered']
    %11 = vsyncpa [#allocation4], 0
    %12 = vsyncpa [#allocation6], 0
    %13 = vsyncpa [#allocation9], 0
    %14 = vsyncpa [#allocation3], 0
    // Predicated region
    $region2: #{textcnn_forward.1} parent=1 // pred_check
      _
    $region3: #{textcnn_forward.1} parent=1 // pred_check_branch
      %16 = sbr.rel (0) target = $region5
    $region4: #{textcnn_forward.1} parent=1 // pred_region
      _
    $region5: #{textcnn_forward.1} parent=1 // pred_fallthru
      _
    // Predicated region
    $region6: #{textcnn_forward.1} parent=1 // pred_check
      _
    $region7: #{textcnn_forward.1} parent=1 // pred_check_branch
      %18 = sbr.rel (0) target = $region9
    $region8: #{textcnn_forward.1} parent=1 // pred_region
      %s20 = ssub.s32 16, 16
      %21 = vsyncadd [#allocation4], %s20
      %s23 = sshll.u32 %s1, 4
      %s24 = int_to_ptr.vmem [resolvable:$true] %s23
      %26 = dma.vmem_to_smem %s24, 16, [#allocation2], [#allocation4]
    $region9: #{textcnn_forward.1} parent=1 // pred_fallthru
      _
    // Predicated region
    $region10: #{textcnn_forward.1} parent=1 // pred_check
      _
    $region11: #{textcnn_forward.1} parent=1 // pred_check_branch
      %28 = sbr.rel (0) target = $region13
    $region12: #{textcnn_forward.1} parent=1 // pred_region
      %s30 = ssub.s32 16, 16
      %31 = vsyncadd [#allocation6], %s30
      %s33 = sshll.u32 %s2, 4
      %s34 = int_to_ptr.vmem [resolvable:$true] %s33
      %36 = dma.vmem_to_smem %s34, 16, [#allocation5], [#allocation6]
    $region13: #{textcnn_forward.1} parent=1 // pred_fallthru
      _
    // Predicated region
    $region14: #{textcnn_forward.1} parent=1 // pred_check
      _
    $region15: #{textcnn_forward.1} parent=1 // pred_check_branch
      %38 = sbr.rel (0) target = $region17
    $region16: #{textcnn_forward.1} parent=1 // pred_region
      %s40 = ssub.s32 16, 16
      %41 = vsyncadd [#allocation6], %s40
      %s43 = sshll.u32 %s3, 4
      %s44 = int_to_ptr.vmem [resolvable:$true] %s43
      %46 = dma.vmem_to_smem %s44, 16, [#allocation7], [#allocation6]
    $region17: #{textcnn_forward.1} parent=1 // pred_fallthru
      _
    // Predicated region
    $region18: #{textcnn_forward.1} parent=1 // pred_check
      _
    $region19: #{textcnn_forward.1} parent=1 // pred_check_branch
      %48 = sbr.rel (0) target = $region21
    $region20: #{textcnn_forward.1} parent=1 // pred_region
      %s50 = ssub.s32 16, 16
      %51 = vsyncadd [#allocation9], %s50
      %s53 = sshll.u32 %s4, 4
      %s54 = int_to_ptr.vmem [resolvable:$true] %s53
      %56 = dma.vmem_to_smem %s54, 16, [#allocation8], [#allocation9]
    $region21: #{textcnn_forward.1} parent=1 // pred_fallthru
      _
    // Predicated region
    $region22: #{textcnn_forward.1} parent=1 // pred_check
      _
    $region23: #{textcnn_forward.1} parent=1 // pred_check_branch
      %58 = sbr.rel (0) target = $region25
    $region24: #{textcnn_forward.1} parent=1 // pred_region
      %s60 = ssub.s32 16, 16
      %61 = vsyncadd [#allocation9], %s60
      %s63 = sshll.u32 %s5, 4
      %s64 = int_to_ptr.vmem [resolvable:$true] %s63
      %66 = dma.vmem_to_smem %s64, 16, [#allocation10], [#allocation9]
    $region25: #{textcnn_forward.1} parent=1 // pred_fallthru
      _
    // Predicated region
    $region26: #{textcnn_forward.1} parent=1 // pred_check
      _
    $region27: #{textcnn_forward.1} parent=1 // pred_check_branch
      %68 = sbr.rel (0) target = $region29
    $region28: #{textcnn_forward.1} parent=1 // pred_region
      %69 = dma.done [#allocation4], 16
    $region29: #{textcnn_forward.1} parent=1 // pred_fallthru
      _
    // Predicated region
    $region30: #{textcnn_forward.1} parent=1 // pred_check
      _
    $region31: #{textcnn_forward.1} parent=1 // pred_check_branch
      %71 = sbr.rel (0) target = $region33
    $region32: #{textcnn_forward.1} parent=1 // pred_region
      %72 = dma.done [#allocation6], 16
    $region33: #{textcnn_forward.1} parent=1 // pred_fallthru
      _
    // Predicated region
    $region34: #{textcnn_forward.1} parent=1 // pred_check
      _
    $region35: #{textcnn_forward.1} parent=1 // pred_check_branch
      %74 = sbr.rel (0) target = $region37
    $region36: #{textcnn_forward.1} parent=1 // pred_region
      %75 = dma.done [#allocation6], 16
    $region37: #{textcnn_forward.1} parent=1 // pred_fallthru
      _
    // Predicated region
    $region38: #{textcnn_forward.1} parent=1 // pred_check
      _
    $region39: #{textcnn_forward.1} parent=1 // pred_check_branch
      %77 = sbr.rel (0) target = $region41
    $region40: #{textcnn_forward.1} parent=1 // pred_region
      %78 = dma.done [#allocation9], 16
    $region41: #{textcnn_forward.1} parent=1 // pred_fallthru
      _
    // Predicated region
    $region42: #{textcnn_forward.1} parent=1 // pred_check
      _
    $region43: #{textcnn_forward.1} parent=1 // pred_check_branch
      %80 = sbr.rel (0) target = $region45
    $region44: #{textcnn_forward.1} parent=1 // pred_region
      %81 = dma.done [#allocation9], 16
    $region45: #{textcnn_forward.1} parent=1 // pred_fallthru
      _
    %82 = sfence
    %v83 = vld [vmem:[%s0] sm:$0x1]
    %s84 = scalar_lea.vmem %s0, 1
    %v85 = vld [vmem:[%s84] sm:$0x1]
    %s86 = scalar_lea.vmem %s0, 2
    %v87 = vld [vmem:[%s86] sm:$0x1]
    %s88 = sld [smem:[#allocation2]]
    %v89 = vstv %s88
    %v90 = vadd.f32 %v89, 0.0
    %s91 = sld [smem:[#allocation2 + $0x1]]
    %v92 = vstv %s91
    %v93 = vadd.f32 %v92, 0.0
    %vm94 = vcmp.eq.s32.totalorder %v83, 0
    %v95 = vsel %vm94, %v90, 0.0
    %v96 = vsel %vm94, %v93, 0.0
    %vm97 = vcmp.eq.s32.totalorder %v85, 0
    %v98 = vsel %vm97, %v90, 0.0
    %v99 = vsel %vm97, %v93, 0.0
    %vm100 = vcmp.eq.s32.totalorder %v87, 0
    %v101 = vsel %vm100, %v90, 0.0
    %v102 = vsel %vm100, %v93, 0.0
    %s103 = sld [smem:[#allocation2 + $0x2]]
    %v104 = vstv %s103
    %v105 = vadd.f32 %v104, 0.0
    %s106 = sld [smem:[#allocation2 + $0x3]]
    %v107 = vstv %s106
    %v108 = vadd.f32 %v107, 0.0
    %vm109 = vcmp.eq.s32.totalorder %v83, 1
    %v110 = vsel %vm109, %v105, %v95
    %v111 = vsel %vm109, %v108, %v96
    %vm112 = vcmp.eq.s32.totalorder %v85, 1
    %v113 = vsel %vm112, %v105, %v98
    %v114 = vsel %vm112, %v108, %v99
    %vm115 = vcmp.eq.s32.totalorder %v87, 1
    %v116 = vsel %vm115, %v105, %v101
    %v117 = vsel %vm115, %v108, %v102
    %s118 = sld [smem:[#allocation2 + $0x4]]
    %v119 = vstv %s118
    %v120 = vadd.f32 %v119, 0.0
    %s121 = sld [smem:[#allocation2 + $0x5]]
    %v122 = vstv %s121
    %v123 = vadd.f32 %v122, 0.0
    %vm124 = vcmp.eq.s32.totalorder %v83, 2
    %v125 = vsel %vm124, %v120, %v110
    %v126 = vsel %vm124, %v123, %v111
    %vm127 = vcmp.eq.s32.totalorder %v85, 2
    %v128 = vsel %vm127, %v120, %v113
    %v129 = vsel %vm127, %v123, %v114
    %vm130 = vcmp.eq.s32.totalorder %v87, 2
    %v131 = vsel %vm130, %v120, %v116
    %v132 = vsel %vm130, %v123, %v117
    %s133 = sld [smem:[#allocation2 + $0x6]]
    %v134 = vstv %s133
    %v135 = vadd.f32 %v134, 0.0
    %s136 = sld [smem:[#allocation2 + $0x7]]
    %v137 = vstv %s136
    %v138 = vadd.f32 %v137, 0.0
    %vm139 = vcmp.eq.s32.totalorder %v83, 3
    %v140 = vsel %vm139, %v135, %v125
    %v141 = vsel %vm139, %v138, %v126
    %vm142 = vcmp.eq.s32.totalorder %v85, 3
    %v143 = vsel %vm142, %v135, %v128
    %v144 = vsel %vm142, %v138, %v129
    %vm145 = vcmp.eq.s32.totalorder %v87, 3
    %v146 = vsel %vm145, %v135, %v131
    %v147 = vsel %vm145, %v138, %v132
    %s148 = sld [smem:[#allocation2 + $0x8]]
    %v149 = vstv %s148
    %v150 = vadd.f32 %v149, 0.0
    %s151 = sld [smem:[#allocation2 + $0x9]]
    %v152 = vstv %s151
    %v153 = vadd.f32 %v152, 0.0
    %vm154 = vcmp.eq.s32.totalorder %v83, 4
    %v155 = vsel %vm154, %v150, %v140
    %v156 = vsel %vm154, %v153, %v141
    %vm157 = vcmp.eq.s32.totalorder %v85, 4
    %v158 = vsel %vm157, %v150, %v143
    %v159 = vsel %vm157, %v153, %v144
    %vm160 = vcmp.eq.s32.totalorder %v87, 4
    %v161 = vsel %vm160, %v150, %v146
    %v162 = vsel %vm160, %v153, %v147
    %s163 = sld [smem:[#allocation2 + $0xa]]
    %v164 = vstv %s163
    %v165 = vadd.f32 %v164, 0.0
    %s166 = sld [smem:[#allocation2 + $0xb]]
    %v167 = vstv %s166
    %v168 = vadd.f32 %v167, 0.0
    %vm169 = vcmp.eq.s32.totalorder %v83, 5
    %v170 = vsel %vm169, %v165, %v155
    %v171 = vsel %vm169, %v168, %v156
    %vm172 = vcmp.eq.s32.totalorder %v85, 5
    %v173 = vsel %vm172, %v165, %v158
    %v174 = vsel %vm172, %v168, %v159
    %vm175 = vcmp.eq.s32.totalorder %v87, 5
    %v176 = vsel %vm175, %v165, %v161
    %v177 = vsel %vm175, %v168, %v162
    %s178 = sld [smem:[#allocation2 + $0xc]]
    %v179 = vstv %s178
    %v180 = vadd.f32 %v179, 0.0
    %s181 = sld [smem:[#allocation2 + $0xd]]
    %v182 = vstv %s181
    %v183 = vadd.f32 %v182, 0.0
    %vm184 = vcmp.eq.s32.totalorder %v83, 6
    %v185 = vsel %vm184, %v180, %v170
    %v186 = vsel %vm184, %v183, %v171
    %vm187 = vcmp.eq.s32.totalorder %v85, 6
    %v188 = vsel %vm187, %v180, %v173
    %v189 = vsel %vm187, %v183, %v174
    %vm190 = vcmp.eq.s32.totalorder %v87, 6
    %v191 = vsel %vm190, %v180, %v176
    %v192 = vsel %vm190, %v183, %v177
    %s193 = sld [smem:[#allocation2 + $0xe]]
    %v194 = vstv %s193
    %v195 = vadd.f32 %v194, 0.0
    %s196 = sld [smem:[#allocation2 + $0xf]]
    %v197 = vstv %s196
    %v198 = vadd.f32 %v197, 0.0
    %vm199 = vcmp.eq.s32.totalorder %v83, 7
    %v200 = vsel %vm199, %v195, %v185
    %v201 = vsel %vm199, %v198, %v186
    %vm202 = vcmp.eq.s32.totalorder %v85, 7
    %v203 = vsel %vm202, %v195, %v188
    %v204 = vsel %vm202, %v198, %v189
    %vm205 = vcmp.eq.s32.totalorder %v87, 7
    %v206 = vsel %vm205, %v195, %v191
    %v207 = vsel %vm205, %v198, %v192
    %s208 = sld [smem:[#allocation2 + $0x10]]
    %v209 = vstv %s208
    %v210 = vadd.f32 %v209, 0.0
    %s211 = sld [smem:[#allocation2 + $0x11]]
    %v212 = vstv %s211
    %v213 = vadd.f32 %v212, 0.0
    %vm214 = vcmp.eq.s32.totalorder %v83, 8
    %v215 = vsel %vm214, %v210, %v200
    %v216 = vsel %vm214, %v213, %v201
    %vm217 = vcmp.eq.s32.totalorder %v85, 8
    %v218 = vsel %vm217, %v210, %v203
    %v219 = vsel %vm217, %v213, %v204
    %vm220 = vcmp.eq.s32.totalorder %v87, 8
    %v221 = vsel %vm220, %v210, %v206
    %v222 = vsel %vm220, %v213, %v207
    %s223 = sld [smem:[#allocation2 + $0x12]]
    %v224 = vstv %s223
    %v225 = vadd.f32 %v224, 0.0
    %s226 = sld [smem:[#allocation2 + $0x13]]
    %v227 = vstv %s226
    %v228 = vadd.f32 %v227, 0.0
    %vm229 = vcmp.eq.s32.totalorder %v83, 9
    %v230 = vsel %vm229, %v225, %v215
    %v231 = vsel %vm229, %v228, %v216
    %vm232 = vcmp.eq.s32.totalorder %v85, 9
    %v233 = vsel %vm232, %v225, %v218
    %v234 = vsel %vm232, %v228, %v219
    %vm235 = vcmp.eq.s32.totalorder %v87, 9
    %v236 = vsel %vm235, %v225, %v221
    %v237 = vsel %vm235, %v228, %v222
    %s238 = sld [smem:[#allocation2 + $0x14]]
    %v239 = vstv %s238
    %v240 = vadd.f32 %v239, 0.0
    %s241 = sld [smem:[#allocation2 + $0x15]]
    %v242 = vstv %s241
    %v243 = vadd.f32 %v242, 0.0
    %vm244 = vcmp.eq.s32.totalorder %v83, 10
    %v245 = vsel %vm244, %v240, %v230
    %v246 = vsel %vm244, %v243, %v231
    %vm247 = vcmp.eq.s32.totalorder %v85, 10
    %v248 = vsel %vm247, %v240, %v233
    %v249 = vsel %vm247, %v243, %v234
    %vm250 = vcmp.eq.s32.totalorder %v87, 10
    %v251 = vsel %vm250, %v240, %v236
    %v252 = vsel %vm250, %v243, %v237
    %s253 = sld [smem:[#allocation2 + $0x16]]
    %v254 = vstv %s253
    %v255 = vadd.f32 %v254, 0.0
    %s256 = sld [smem:[#allocation2 + $0x17]]
    %v257 = vstv %s256
    %v258 = vadd.f32 %v257, 0.0
    %vm259 = vcmp.eq.s32.totalorder %v83, 11
    %v260 = vsel %vm259, %v255, %v245
    %v261 = vsel %vm259, %v258, %v246
    %vm262 = vcmp.eq.s32.totalorder %v85, 11
    %v263 = vsel %vm262, %v255, %v248
    %v264 = vsel %vm262, %v258, %v249
    %vm265 = vcmp.eq.s32.totalorder %v87, 11
    %v266 = vsel %vm265, %v255, %v251
    %v267 = vsel %vm265, %v258, %v252
    %s268 = sld [smem:[#allocation2 + $0x18]]
    %v269 = vstv %s268
    %v270 = vadd.f32 %v269, 0.0
    %s271 = sld [smem:[#allocation2 + $0x19]]
    %v272 = vstv %s271
    %v273 = vadd.f32 %v272, 0.0
    %vm274 = vcmp.eq.s32.totalorder %v83, 12
    %v275 = vsel %vm274, %v270, %v260
    %v276 = vsel %vm274, %v273, %v261
    %vm277 = vcmp.eq.s32.totalorder %v85, 12
    %v278 = vsel %vm277, %v270, %v263
    %v279 = vsel %vm277, %v273, %v264
    %vm280 = vcmp.eq.s32.totalorder %v87, 12
    %v281 = vsel %vm280, %v270, %v266
    %v282 = vsel %vm280, %v273, %v267
    %s283 = sld [smem:[#allocation2 + $0x1a]]
    %v284 = vstv %s283
    %v285 = vadd.f32 %v284, 0.0
    %s286 = sld [smem:[#allocation2 + $0x1b]]
    %v287 = vstv %s286
    %v288 = vadd.f32 %v287, 0.0
    %vm289 = vcmp.eq.s32.totalorder %v83, 13
    %v290 = vsel %vm289, %v285, %v275
    %v291 = vsel %vm289, %v288, %v276
    %vm292 = vcmp.eq.s32.totalorder %v85, 13
    %v293 = vsel %vm292, %v285, %v278
    %v294 = vsel %vm292, %v288, %v279
    %vm295 = vcmp.eq.s32.totalorder %v87, 13
    %v296 = vsel %vm295, %v285, %v281
    %v297 = vsel %vm295, %v288, %v282
    %s298 = sld [smem:[#allocation2 + $0x1c]]
    %v299 = vstv %s298
    %v300 = vadd.f32 %v299, 0.0
    %s301 = sld [smem:[#allocation2 + $0x1d]]
    %v302 = vstv %s301
    %v303 = vadd.f32 %v302, 0.0
    %vm304 = vcmp.eq.s32.totalorder %v83, 14
    %v305 = vsel %vm304, %v300, %v290
    %v306 = vsel %vm304, %v303, %v291
    %vm307 = vcmp.eq.s32.totalorder %v85, 14
    %v308 = vsel %vm307, %v300, %v293
    %v309 = vsel %vm307, %v303, %v294
    %vm310 = vcmp.eq.s32.totalorder %v87, 14
    %v311 = vsel %vm310, %v300, %v296
    %v312 = vsel %vm310, %v303, %v297
    %s313 = sld [smem:[#allocation2 + $0x1e]]
    %v314 = vstv %s313
    %v315 = vadd.f32 %v314, 0.0
    %s316 = sld [smem:[#allocation2 + $0x1f]]
    %v317 = vstv %s316
    %v318 = vadd.f32 %v317, 0.0
    %vm319 = vcmp.eq.s32.totalorder %v83, 15
    %v320 = vsel %vm319, %v315, %v305
    %v321 = vsel %vm319, %v318, %v306
    %vm322 = vcmp.eq.s32.totalorder %v85, 15
    %v323 = vsel %vm322, %v315, %v308
    %v324 = vsel %vm322, %v318, %v309
    %vm325 = vcmp.eq.s32.totalorder %v87, 15
    %v326 = vsel %vm325, %v315, %v311
    %v327 = vsel %vm325, %v318, %v312
    %s328 = sld [smem:[#allocation5]]
    %s329 = sld [smem:[#allocation5 + $0x1]]
    %s330 = sld [smem:[#allocation5 + $0x2]]
    %s331 = sld [smem:[#allocation5 + $0x3]]
    %s332 = sld [smem:[#allocation5 + $0x4]]
    %s333 = sld [smem:[#allocation5 + $0x5]]
    %s334 = sld [smem:[#allocation5 + $0x6]]
    %s335 = sld [smem:[#allocation5 + $0x7]]
    %s336 = sld [smem:[#allocation5 + $0x8]]
    %s337 = sld [smem:[#allocation5 + $0x9]]
    %s338 = sld [smem:[#allocation5 + $0xa]]
    %s339 = sld [smem:[#allocation5 + $0xb]]
    %s340 = sld [smem:[#allocation7]]
    %v341 = vstv %s340
    %v342 = vadd.f32 %v341, 0.0
    %v343 = vstv %s328
    %v344 = vmul.f32 %v320, %v343
    %v345 = vadd.f32 %v342, %v344
    %v346 = vstv %s329
    %v347 = vmul.f32 %v321, %v346
    %v348 = vadd.f32 %v345, %v347
    %v349 = vstv %s330
    %v350 = vmul.f32 %v323, %v349
    %v351 = vadd.f32 %v348, %v350
    %v352 = vstv %s331
    %v353 = vmul.f32 %v324, %v352
    %v354 = vadd.f32 %v351, %v353
    %v355 = vmax.f32 %v354, 0.0
    %v356 = vmul.f32 %v323, %v343
    %v357 = vadd.f32 %v342, %v356
    %v358 = vmul.f32 %v324, %v346
    %v359 = vadd.f32 %v357, %v358
    %v360 = vmul.f32 %v326, %v349
    %v361 = vadd.f32 %v359, %v360
    %v362 = vmul.f32 %v327, %v352
    %v363 = vadd.f32 %v361, %v362
    %v364 = vmax.f32 %v363, 0.0
    %v365 = vmax.f32 %v355, %v364
    %s366 = sld [smem:[#allocation7 + $0x1]]
    %v367 = vstv %s366
    %v368 = vadd.f32 %v367, 0.0
    %v369 = vstv %s332
    %v370 = vmul.f32 %v320, %v369
    %v371 = vadd.f32 %v368, %v370
    %v372 = vstv %s333
    %v373 = vmul.f32 %v321, %v372
    %v374 = vadd.f32 %v371, %v373
    %v375 = vstv %s334
    %v376 = vmul.f32 %v323, %v375
    %v377 = vadd.f32 %v374, %v376
    %v378 = vstv %s335
    %v379 = vmul.f32 %v324, %v378
    %v380 = vadd.f32 %v377, %v379
    %v381 = vmax.f32 %v380, 0.0
    %v382 = vmul.f32 %v323, %v369
    %v383 = vadd.f32 %v368, %v382
    %v384 = vmul.f32 %v324, %v372
    %v385 = vadd.f32 %v383, %v384
    %v386 = vmul.f32 %v326, %v375
    %v387 = vadd.f32 %v385, %v386
    %v388 = vmul.f32 %v327, %v378
    %v389 = vadd.f32 %v387, %v388
    %v390 = vmax.f32 %v389, 0.0
    %v391 = vmax.f32 %v381, %v390
    %s392 = sld [smem:[#allocation7 + $0x2]]
    %v393 = vstv %s392
    %v394 = vadd.f32 %v393, 0.0
    %v395 = vstv %s336
    %v396 = vmul.f32 %v320, %v395
    %v397 = vadd.f32 %v394, %v396
    %v398 = vstv %s337
    %v399 = vmul.f32 %v321, %v398
    %v400 = vadd.f32 %v397, %v399
    %v401 = vstv %s338
    %v402 = vmul.f32 %v323, %v401
    %v403 = vadd.f32 %v400, %v402
    %v404 = vstv %s339
    %v405 = vmul.f32 %v324, %v404
    %v406 = vadd.f32 %v403, %v405
    %v407 = vmax.f32 %v406, 0.0
    %v408 = vmul.f32 %v323, %v395
    %v409 = vadd.f32 %v394, %v408
    %v410 = vmul.f32 %v324, %v398
    %v411 = vadd.f32 %v409, %v410
    %v412 = vmul.f32 %v326, %v401
    %v413 = vadd.f32 %v411, %v412
    %v414 = vmul.f32 %v327, %v404
    %v415 = vadd.f32 %v413, %v414
    %v416 = vmax.f32 %v415, 0.0
    %v417 = vmax.f32 %v407, %v416
    %s418 = sld [smem:[#allocation8]]
    %s419 = sld [smem:[#allocation8 + $0x1]]
    %s420 = sld [smem:[#allocation8 + $0x2]]
    %s421 = sld [smem:[#allocation8 + $0x3]]
    %s422 = sld [smem:[#allocation8 + $0x4]]
    %s423 = sld [smem:[#allocation8 + $0x5]]
    %s424 = sld [smem:[#allocation10]]
    %v425 = vstv %s424
    %v426 = vadd.f32 %v425, 0.0
    %v427 = vstv %s418
    %v428 = vmul.f32 %v365, %v427
    %v429 = vadd.f32 %v426, %v428
    %v430 = vstv %s419
    %v431 = vmul.f32 %v391, %v430
    %v432 = vadd.f32 %v429, %v431
    %v433 = vstv %s420
    %v434 = vmul.f32 %v417, %v433
    %v435 = vadd.f32 %v432, %v434
    %436 = vst [vmem:[#allocation11] sm:$0x1] %v435
    %s437 = sld [smem:[#allocation10 + $0x1]]
    %v438 = vstv %s437
    %v439 = vadd.f32 %v438, 0.0
    %v440 = vstv %s421
    %v441 = vmul.f32 %v365, %v440
    %v442 = vadd.f32 %v439, %v441
    %v443 = vstv %s422
    %v444 = vmul.f32 %v391, %v443
    %v445 = vadd.f32 %v442, %v444
    %v446 = vstv %s423
    %v447 = vmul.f32 %v417, %v446
    %v448 = vadd.f32 %v445, %v447
    %s449 = scalar_lea.vmem [#allocation11], 1
    %450 = vst [vmem:[%s449] sm:$0x1] %v448
    // Predicated region
    $region46: #{textcnn_forward.1} parent=1 // pred_check
      _
    $region47: #{textcnn_forward.1} parent=1 // pred_check_branch
      %452 = sbr.rel (0) target = $region49
    $region48: #{textcnn_forward.1} parent=1 // pred_region
      %s454 = ssub.s32 32, 32
      %455 = vsyncadd [#allocation3], %s454
      %s456 = sshll.u32 [#allocation11], 4
      %s457 = int_to_ptr.vmem [resolvable:$true] %s456
      %462 = dma.vmem_to_hbm [thread:$0]  %s457, 32, %s6, [#allocation3], 16, 16, 1
    $region49: #{textcnn_forward.1} parent=1 // pred_fallthru
      _
    // Predicated region
    $region50: #{textcnn_forward.1} parent=1 // pred_check
      _
    $region51: #{textcnn_forward.1} parent=1 // pred_check_branch
      %464 = sbr.rel (0) target = $region53
    $region52: #{textcnn_forward.1} parent=1 // pred_region
      %465 = dma.done [#allocation3], 32
    $region53: #{textcnn_forward.1} parent=1 // pred_fallthru
      _
    %466 = vsyncpa [#allocation3], 1
    %467 = vsyncpa [#allocation4], 1
    %468 = vsyncpa [#allocation6], 1
    %469 = vsyncpa [#allocation9], 1

</llo_original>
